<compile_context>
chip_gen: v7x
topology: tpu7x:2x2x1
jax: 0.10.0
libtpu: 0.0.40
codegen_flags: <defaults>
</compile_context>

<pallas_src>
import jax
import jax.numpy as jnp
from jax import lax
from jax.experimental import pallas as pl
from jax.experimental.pallas import tpu as pltpu

HIDDEN = 1024            # l2 / l3 hidden width (fixed by the module)
CHUNK = 128              # hidden lanes per inner fori step (1 vreg-row of params)
NUM_CHUNKS = HIDDEN // CHUNK
SUB_B = 128              # batch rows per inner sub-tile (SUB_B*CHUNK = 16 vregs / temp)
MAX_BLOCK_B = 512        # batch rows per grid step (sweepable 512-2048 for small in_dim)


def _round_up(x: int, m: int) -> int:
    return ((x + m - 1) // m) * m


def _make_kernel(sub_b: int, num_sub: int):
    def kernel(x_ref, w1_ref, cp_ref, sc_ref, o_ref):
        # w1_ref (VMEM, (1, in_dim))             : l1 weight row
        # cp_ref (VMEM, (NUM_CHUNKS, 3, CHUNK))  : [c,0]=0.5*w2, [c,1]=0.5*b2, [c,2]=0.5*w3
        # sc_ref (SMEM, (2,))                    : [b1, b3 + 0.5*sum(w3)]
        b1 = sc_ref[0]
        b3p = sc_ref[1]
        w1 = w1_ref[...].astype(jnp.float32)                          # (1, in_dim)

        @pl.loop(0, num_sub)
        def _(s):
            off_b = pl.multiple_of(s * sub_b, sub_b)
            xs = x_ref[pl.ds(off_b, sub_b), :].astype(jnp.float32)    # (sub_b, in_dim)

            # l1: VPU multiply + one XLU lane reduction (no degenerate N=1 MXU matmul).
            h = jnp.sum(xs * w1, axis=-1, keepdims=True) + b1         # (sub_b, 1)

            # Hoisted lane-broadcast of h, reused by every chunk iteration.
            hb = jnp.broadcast_to(h, (sub_b, CHUNK))                  # (sub_b, CHUNK)

            # Fold h into lane 0 of the wide accumulator so a single final lane
            # reduction yields  h + sum_j 0.5*w3_j * tanh(0.5*w2_j*h + 0.5*b2_j).
            lane = lax.broadcasted_iota(jnp.int32, (sub_b, CHUNK), 1)
            acc0 = jnp.where(lane == 0, hb, 0.0)

            def chunk_body(c, acc):
                pc = cp_ref[c]                                        # (3, CHUNK)
                t = jnp.tanh(hb * pc[0:1, :] + pc[1:2, :])            # 1 EUP op / element
                return acc + t * pc[2:3, :]                           # wide accumulate (VPU)

            acc = lax.fori_loop(0, NUM_CHUNKS, chunk_body, acc0)
            # Single lane reduction per sub-tile (instead of one per chunk).
            out = jnp.sum(acc, axis=-1, keepdims=True) + b3p          # (sub_b, 1)
            o_ref[pl.ds(off_b, sub_b), :] = out.astype(o_ref.dtype)

    return kernel


def tilde_gamma_eta(x, w1, b1, w2, b2, w3, b3):
    """Params in torch.nn.Linear layout:
       w1 (1, in_dim), b1 (1,), w2 (HIDDEN, 1), b2 (HIDDEN,), w3 (1, HIDDEN), b3 (1,)."""
    B, in_dim = x.shape
    f32 = jnp.float32

    # ---- pack parameters (sigmoid -> tanh constants folded here, exact in f32) ----
    #   sigmoid(z) = 0.5 + 0.5*tanh(0.5*z)
    #   l3(sigmoid(l2(h))) = sum_j (0.5*w3_j)*tanh((0.5*w2_j)*h + 0.5*b2_j)
    #                        + b3 + 0.5*sum_j w3_j
    w1_row = w1.reshape(1, in_dim).astype(f32)                        # (1, in_dim)
    w2h = (0.5 * w2.astype(f32)).reshape(NUM_CHUNKS, CHUNK)
    b2h = (0.5 * b2.astype(f32)).reshape(NUM_CHUNKS, CHUNK)
    w3h = (0.5 * w3.astype(f32)).reshape(NUM_CHUNKS, CHUNK)
    chunk_params = jnp.stack([w2h, b2h, w3h], axis=1)                 # (NUM_CHUNKS, 3, CHUNK)
    b3_folded = jnp.ravel(b3).astype(f32)[0] + 0.5 * jnp.sum(w3.astype(f32))
    scalars = jnp.stack([jnp.ravel(b1).astype(f32)[0], b3_folded])    # (2,) -> SMEM

    # ---- batch tiling ----
    # Large tiles amortize the ~0.35 us/step overhead; >=2 grid steps whenever
    # B > 128 so ("parallel",) can span both v7x TensorCores.
    if B <= SUB_B:
        tb = _round_up(B, 8)
        sub_b = tb
    elif B <= 2 * MAX_BLOCK_B:
        tb = _round_up(pl.cdiv(B, 2), SUB_B)
        sub_b = SUB_B
    else:
        tb = MAX_BLOCK_B
        sub_b = SUB_B
    num_sub = tb // sub_b
    grid = (pl.cdiv(B, tb),)

    return pl.pallas_call(
        _make_kernel(sub_b, num_sub),
        out_shape=jax.ShapeDtypeStruct((B, 1), f32),
        grid=grid,
        in_specs=[
            pl.BlockSpec((tb, in_dim), lambda i: (i, 0)),             # x: pipelined over batch
            pl.BlockSpec((1, in_dim), lambda i: (0, 0)),              # w1: resident
            pl.BlockSpec((NUM_CHUNKS, 3, CHUNK), lambda i: (0, 0, 0)),  # folded l2/l3 params
            pl.BlockSpec(memory_space=pltpu.MemorySpace.SMEM),        # [b1, b3']
        ],
        out_specs=pl.BlockSpec((tb, 1), lambda i: (i, 0)),
        compiler_params=pltpu.CompilerParams(
            dimension_semantics=("parallel",)),
    )(x, w1_row, chunk_params, scalars)


def reference(x, w1, b1, w2, b2, w3, b3):
    hp = lax.Precision.HIGHEST
    xf = x.astype(jnp.float32)
    h = jnp.dot(xf, w1.T, precision=hp) + b1
    z = jnp.dot(h, w2.T, precision=hp) + b2
    return h + jnp.dot(jax.nn.sigmoid(z), w3.T, precision=hp) + b3


if __name__ == "__main__":
    key = jax.random.PRNGKey(0)

    def make_case(k, B, in_dim):
        k_x, k_w1, k_w2, k_w3 = jax.random.split(k, 4)
        x = jax.random.normal(k_x, (B, in_dim), dtype=jnp.float32)
        # torch init: weights ~ U(0, 1), biases zero; torch nn.Linear layouts.
        w1 = jax.random.uniform(k_w1, (1, in_dim), dtype=jnp.float32)
        b1 = jnp.zeros((1,), dtype=jnp.float32)
        w2 = jax.random.uniform(k_w2, (HIDDEN, 1), dtype=jnp.float32)
        b2 = jnp.zeros((HIDDEN,), dtype=jnp.float32)
        w3 = jax.random.uniform(k_w3, (1, HIDDEN), dtype=jnp.float32)
        b3 = jnp.zeros((1,), dtype=jnp.float32)
        return (x, w1, b1, w2, b2, w3, b3)

    k1, k2 = jax.random.split(key)
    cases = [
        make_case(k1, 8, 32),    # tiny single-tile path
        make_case(k2, 320, 1),   # 2 grid steps + 2 sub-tiles + partial last block,
                                 # realistic in_dim = 1 (gamma(t) network)
    ]
    for args in cases:
        out = jax.block_until_ready(tilde_gamma_eta(*args))
        ref = reference(*args)
        assert out.shape == (args[0].shape[0], 1)
        assert bool(jnp.allclose(out, ref, atol=5e-3, rtol=1e-3)), (
            float(jnp.max(jnp.abs(out - ref))))
    print("KERNEL_OK")
</pallas_src>

<mosaic_0001>
module attributes {stable_mosaic.version = 11 : i64} {
  func.func @kernel(%arg0: i32, %arg1: memref<8x32xf32, #tpu.memory_space<vmem>>, %arg2: memref<1x32xf32, #tpu.memory_space<vmem>>, %arg3: memref<8x3x128xf32, #tpu.memory_space<vmem>>, %arg4: memref<2xf32, #tpu.memory_space<smem>>, %arg5: memref<8x1xf32, #tpu.memory_space<vmem>>) attributes {dimension_semantics = [#tpu.dimension_semantics<parallel>], iteration_bounds = array<i64: 1>, scalar_prefetch = 0 : i64, scratch_operands = 0 : i64, tpu.core_type = #tpu.core_type<tc>, window_params = [{transform_indices = @transform_0, window_bounds = array<i64: 8, 32>}, {pipeline_mode = #tpu.pipeline_mode<synchronous>, transform_indices = @transform_1, window_bounds = array<i64: 1, 32>}, {pipeline_mode = #tpu.pipeline_mode<synchronous>, transform_indices = @transform_2, window_bounds = array<i64: 8, 3, 128>}, {transform_indices = @transform_3, window_bounds = array<i64: 2>}, {transform_indices = @transform_4, window_bounds = array<i64: 8, 1>}]} {
    %c0 = arith.constant 0 : index
    %0 = memref.load %arg4[%c0] : memref<2xf32, #tpu.memory_space<smem>>
    %c1 = arith.constant 1 : index
    %1 = memref.load %arg4[%c1] : memref<2xf32, #tpu.memory_space<smem>>
    %c0_0 = arith.constant 0 : index
    %c0_1 = arith.constant 0 : index
    %2 = vector.load %arg2[%c0_0, %c0_1] : memref<1x32xf32, #tpu.memory_space<vmem>>, vector<1x32xf32>
    %c0_i32 = arith.constant 0 : i32
    %c1_i32 = arith.constant 1 : i32
    %3 = arith.muli %c0_i32, %c1_i32 : i32
    %c0_i32_2 = arith.constant 0 : i32
    %4 = arith.addi %c0_i32_2, %3 : i32
    %c8_i32 = arith.constant 8 : i32
    %5 = arith.muli %4, %c8_i32 : i32
    %6 = tpu.assume_multiple %5, 8 : i32
    %7 = arith.index_cast %6 : i32 to index
    %c0_3 = arith.constant 0 : index
    %8 = vector.load %arg1[%7, %c0_3] : memref<8x32xf32, #tpu.memory_space<vmem>>, vector<8x32xf32>
    %9 = vector.broadcast %2 : vector<1x32xf32> to vector<8x32xf32>
    %10 = arith.mulf %8, %9 : vector<8x32xf32>
    %cst = arith.constant dense<0.000000e+00> : vector<8xf32>
    %11 = vector.multi_reduction <add>, %10, %cst [1] : vector<8x32xf32> to vector<8xf32>
    %12 = vector.shape_cast %11 : vector<8xf32> to vector<8x1xf32>
    %13 = vector.broadcast %0 : f32 to vector<8x1xf32>
    %14 = arith.addf %12, %13 : vector<8x1xf32>
    %15 = vector.shape_cast %14 : vector<8x1xf32> to vector<8x1xf32>
    %16 = vector.broadcast %15 : vector<8x1xf32> to vector<8x128xf32>
    %17 = tpu.iota {dimensions = array<i32: 1>} : vector<8x128xi32>
    %c0_i32_4 = arith.constant 0 : i32
    %18 = vector.broadcast %c0_i32_4 : i32 to vector<8x128xi32>
    %19 = arith.cmpi eq, %17, %18 : vector<8x128xi32>
    %cst_5 = arith.constant 0.000000e+00 : f32
    %20 = vector.broadcast %cst_5 : f32 to vector<8x128xf32>
    %21 = arith.select %19, %16, %20 : vector<8x128xi1>, vector<8x128xf32>
    %c0_i32_6 = arith.constant 0 : i32
    %c8_i32_7 = arith.constant 8 : i32
    %22 = arith.addi %c0_i32_6, %c8_i32_7 : i32
    %c1_i32_8 = arith.constant 1 : i32
    %23 = scf.for %arg6 = %c0_i32_6 to %22 step %c1_i32_8 iter_args(%arg7 = %21) -> (vector<8x128xf32>)  : i32 {
      %30 = arith.index_cast %arg6 : i32 to index
      %c0_13 = arith.constant 0 : index
      %c0_14 = arith.constant 0 : index
      %31 = vector.load %arg3[%30, %c0_13, %c0_14] : memref<8x3x128xf32, #tpu.memory_space<vmem>>, vector<1x3x128xf32>
      %32 = vector.shape_cast %31 : vector<1x3x128xf32> to vector<3x128xf32>
      %33 = vector.extract_strided_slice %32 {offsets = [0, 0], sizes = [1, 128], strides = [1, 1]} : vector<3x128xf32> to vector<1x128xf32>
      %34 = vector.broadcast %33 : vector<1x128xf32> to vector<8x128xf32>
      %35 = arith.mulf %16, %34 : vector<8x128xf32>
      %36 = vector.extract_strided_slice %32 {offsets = [1, 0], sizes = [1, 128], strides = [1, 1]} : vector<3x128xf32> to vector<1x128xf32>
      %37 = vector.broadcast %36 : vector<1x128xf32> to vector<8x128xf32>
      %38 = arith.addf %35, %37 : vector<8x128xf32>
      %39 = math.tanh %38 : vector<8x128xf32>
      %40 = vector.extract_strided_slice %32 {offsets = [2, 0], sizes = [1, 128], strides = [1, 1]} : vector<3x128xf32> to vector<1x128xf32>
      %41 = vector.broadcast %40 : vector<1x128xf32> to vector<8x128xf32>
      %42 = arith.mulf %39, %41 : vector<8x128xf32>
      %43 = arith.addf %arg7, %42 : vector<8x128xf32>
      scf.yield %43 : vector<8x128xf32>
    }
    %c8_i32_9 = arith.constant 8 : i32
    %cst_10 = arith.constant dense<0.000000e+00> : vector<8xf32>
    %24 = vector.multi_reduction <add>, %23, %cst_10 [1] : vector<8x128xf32> to vector<8xf32>
    %25 = vector.shape_cast %24 : vector<8xf32> to vector<8x1xf32>
    %26 = vector.broadcast %1 : f32 to vector<8x1xf32>
    %27 = arith.addf %25, %26 : vector<8x1xf32>
    %28 = arith.index_cast %6 : i32 to index
    %c0_11 = arith.constant 0 : index
    %29 = vector.load %arg5[%28, %c0_11] : memref<8x1xf32, #tpu.memory_space<vmem>>, vector<8x1xf32>
    tpu.vector_store %arg5[%28, %c0_11], %27 {strides = array<i32>} : memref<8x1xf32, #tpu.memory_space<vmem>>, vector<8x1xf32>,
    %c1_i32_12 = arith.constant 1 : i32
    return
  }
  func.func @transform_0(%arg0: i32) -> (i32, i32) {
    %c0_i32 = arith.constant 0 : i32
    %c0_i32_0 = arith.constant 0 : i32
    return %arg0, %c0_i32 : i32, i32
  }
  func.func @transform_1(%arg0: i32) -> (i32, i32) {
    %c0_i32 = arith.constant 0 : i32
    %c0_i32_0 = arith.constant 0 : i32
    %c0_i32_1 = arith.constant 0 : i32
    return %c0_i32, %c0_i32_0 : i32, i32
  }
  func.func @transform_2(%arg0: i32) -> (i32, i32, i32) {
    %c0_i32 = arith.constant 0 : i32
    %c0_i32_0 = arith.constant 0 : i32
    %c0_i32_1 = arith.constant 0 : i32
    %c0_i32_2 = arith.constant 0 : i32
    return %c0_i32, %c0_i32_0, %c0_i32_1 : i32, i32, i32
  }
  func.func @transform_3(%arg0: i32) -> i32 {
    %c0_i32 = arith.constant 0 : i32
    %c0_i32_0 = arith.constant 0 : i32
    return %c0_i32 : i32
  }
  func.func @transform_4(%arg0: i32) -> (i32, i32) {
    %c0_i32 = arith.constant 0 : i32
    %c0_i32_0 = arith.constant 0 : i32
    return %arg0, %c0_i32 : i32, i32
  }
}

</mosaic_0001>

<llo_original>
// kernel: tpu_custom_call.1
$region0: #{tpu_custom_call.1}
  #allocation0 [shape = 'u32[]', space=smem, size = 0x4, offset = 0x4, fixed_abs, tag = 'smem constant byte address 0x4 - core index']
  #allocation1 [shape = 'u32[144,128]{1,0:T(1,128)}', space=vmem, size = 0x12000, scoped, tag = 'internal scratch']
  %s0 = inlined_call_operand.vmem [shape: f32[8,32], index: 0, kind: input, shape index: {}]
  %s1 = inlined_call_operand.vmem [shape: f32[1,32], index: 1, kind: input, shape index: {}]
  %s2 = inlined_call_operand.vmem [shape: f32[8,3,128], index: 2, kind: input, shape index: {}]
  %s3 = inlined_call_operand.vmem [shape: f32[2], index: 3, kind: input, shape index: {}]
  %s4 = inlined_call_operand.vmem [shape: f32[8,1], index: 4, kind: output, shape index: {}]
  %s5 = sld [smem:[#allocation0]]
  $region37: #{tpu_custom_call.1} parent=0
    _
  %s7 = ssub.s32 1, %s5
  %s8 = scalar_select 0, %s7, %s5
  $region1: #{tpu_custom_call.1} parent=0
    #allocation2 [shape = 'u8[512]{0}', space=smem, size = 0x200, scoped, tag = 'input window, operand 3, single buffered']
    #allocation3 [shape = 's32[1]{0}', space=sflag, size = 0x4, scoped, tag = 'scoped memory for tpu_custom_call.1']
    %9 = vsyncpa [#allocation3], 0
    // Predicated region
    $region2: #{tpu_custom_call.1} parent=1 // pred_check
      _
    $region3: #{tpu_custom_call.1} parent=1 // pred_check_branch
      %11 = sbr.rel (0) target = $region5
    $region4: #{tpu_custom_call.1} parent=1 // pred_region
      _
    $region5: #{tpu_custom_call.1} parent=1 // pred_fallthru
      _
    // Predicated region
    $region6: #{tpu_custom_call.1} parent=1 // pred_check
      _
    $region7: #{tpu_custom_call.1} parent=1 // pred_check_branch
      %13 = sbr.rel (0) target = $region9
    $region8: #{tpu_custom_call.1} parent=1 // pred_region
      _
    $region9: #{tpu_custom_call.1} parent=1 // pred_fallthru
      _
    // Predicated region
    $region10: #{tpu_custom_call.1} parent=1 // pred_check
      _
    $region11: #{tpu_custom_call.1} parent=1 // pred_check_branch
      %15 = sbr.rel (0) target = $region13
    $region12: #{tpu_custom_call.1} parent=1 // pred_region
      _
    $region13: #{tpu_custom_call.1} parent=1 // pred_fallthru
      _
    // Predicated region
    $region14: #{tpu_custom_call.1} parent=1 // pred_check
      _
    $region15: #{tpu_custom_call.1} parent=1 // pred_check_branch
      %17 = sbr.rel (0) target = $region17
    $region16: #{tpu_custom_call.1} parent=1 // pred_region
      %s19 = ssub.s32 16, 16
      %20 = vsyncadd [#allocation3], %s19
      %s22 = sshll.u32 %s3, 4
      %s23 = int_to_ptr.vmem [resolvable:$true] %s22
      %25 = dma.vmem_to_smem %s23, 16, [#allocation2], [#allocation3]
    $region17: #{tpu_custom_call.1} parent=1 // pred_fallthru
      _
    // Predicated region
    $region18: #{tpu_custom_call.1} parent=1 // pred_check
      _
    $region19: #{tpu_custom_call.1} parent=1 // pred_check_branch
      %27 = sbr.rel (0) target = $region21
    $region20: #{tpu_custom_call.1} parent=1 // pred_region
      %28 = dma.done [#allocation3], 16
    $region21: #{tpu_custom_call.1} parent=1 // pred_fallthru
      _
    %29 = sfence
    %s30 = sld [smem:[#allocation2]]
    %s31 = sld [smem:[#allocation2 + $0x1]]
    %v32 = vld [vmem:[%s1] sm:$0x1]
    %v33 = vld [vmem:[%s0] sm:$0xff]
    %v35 = vlaneseq
    %v36 = vshrl.u32 %v35, 7
    %v37 = vsub.s32 0, %v36
    %v38 = vrot.slane %v32, %v37
    %v40 = vmul.f32 %v33, %v38
    %vm41 = vcmask 261120
    %v42 = vsel %vm41, %v40, 0.0
    %43 = vadd.xlane.f32.xlu0 %v42
    %v44 = vpop.xlane.xlu0 %43
    %v45 = vstv %s30
    %v46 = vadd.f32 %v44, %v45
    %v47 = vlaneseq
    %v48 = vand.u32 %v47, 127
    %vm49 = vcmp.eq.s32.totalorder %v48, 0
    %v50 = vsel %vm49, %v46, 0.0
    loop: start=0, step=1, limit=8
    $region22: #{tpu_custom_call.1} parent=1 // loop_pre_header
      _
    $region23: #{tpu_custom_call.1} parent=1 // loop_header
      %s52 = sphi 0, %s56
      %p53 = scmp.ge.s32.totalorder %s52, 8
      %v57 = vphi %v50, %v77
    $region24: #{tpu_custom_call.1} parent=1 // loop_header_branch
      %55 = sbr.rel (%p53) target = $region28
    $region25: #{tpu_custom_call.1} parent=1 // loop_body
      %s58 = smul.u32 %s52, 4
      %s59 = scalar_lea.vmem %s2, %s58
      %v60 = vld [vmem:[%s59] sm:$0x7]
      %v61 = vlaneseq
      %v62 = vshrl.u32 %v61, 7
      %v63 = vsub.s32 0, %v62
      %v64 = vrot.slane %v60, %v63
      %v65 = vmul.f32 %v46, %v64
      %v66 = vlaneseq
      %v67 = vshrl.u32 %v66, 7
      %v68 = vsub.s32 1, %v67
      %v69 = vrot.slane %v60, %v68
      %v70 = vadd.f32 %v65, %v69
      %v71 = vtanh.pop %v70
      %v72 = vlaneseq
      %v73 = vshrl.u32 %v72, 7
      %v74 = vsub.s32 2, %v73
      %v75 = vrot.slane %v60, %v74
      %v76 = vmul.f32 %v71, %v75
      %v77 = vadd.f32 %v57, %v76
    $region26: #{tpu_custom_call.1} parent=1 // loop_footer
      %s56 = sadd.s32 1, %s52
    $region27: #{tpu_custom_call.1} parent=1 // loop_footer_branch
      %51 = sbr.rel target = $region23
    $region28: #{tpu_custom_call.1} parent=1 // loop_exit
      _
    %78 = vadd.xlane.f32.xlu0 %v57
    %v79 = vpop.xlane.xlu0 %78
    %v80 = vstv %s31
    %v81 = vadd.f32 %v79, %v80
    %vm82 = vcmask 7168
    %83 = vst.msk [vmem:[%s4] sm:$0xff] %vm82, %v81
    // Predicated region
    $region29: #{tpu_custom_call.1} parent=1 // pred_check
      _
    $region30: #{tpu_custom_call.1} parent=1 // pred_check_branch
      %85 = sbr.rel (0) target = $region32
    $region31: #{tpu_custom_call.1} parent=1 // pred_region
      _
    $region32: #{tpu_custom_call.1} parent=1 // pred_fallthru
      _
    // Predicated region
    $region33: #{tpu_custom_call.1} parent=1 // pred_check
      _
    $region34: #{tpu_custom_call.1} parent=1 // pred_check_branch
      %87 = sbr.rel (0) target = $region36
    $region35: #{tpu_custom_call.1} parent=1 // pred_region
      _
    $region36: #{tpu_custom_call.1} parent=1 // pred_fallthru
      _
    %88 = vsyncpa [#allocation3], 1

</llo_original>
